<compile_context>
chip_gen: v6e
topology: v6e:2x2x1
jax: 0.10.0
libtpu: 0.0.40
codegen_flags: <defaults>
</compile_context>

<pallas_src>
import functools

import jax
import jax.numpy as jnp
from jax import lax
from jax.experimental import pallas as pl
from jax.experimental.pallas import tpu as pltpu


_TARGET_BLOCK_ELEMS = 1 << 20          # ~4 MiB of f32 logits per grid step
_LANE = 128


def _focal_loss_kernel(x_ref, t_ref, out_ref, *, gamma, blocks_per_core,
                       valid_rows, valid_cols, needs_mask):
    """Fused focal loss on one (tr, tc) tile, folded into the (8, tc) resident
    accumulator block owned by this megacore chunk."""
    gi = pl.program_id(1)

    @pl.when(gi == 0)
    def _init():
        out_ref[...] = jnp.zeros_like(out_ref)

    x = x_ref[...].astype(jnp.float32)
    t = t_ref[...].astype(jnp.float32)
    tr, tc = x.shape

    xt = x * t
    u = xt + xt - x                                   # x * (2t - 1)
    e_x = jnp.exp(-jnp.abs(x))
    # x - x*t + max(-x,0) + log(exp(-max)+exp(-x-max)) == relu(x) - x*t + log(1+e^-|x|)
    bce = jnp.maximum(x, 0.0) - xt + jnp.log(1.0 + e_x)

    e_u = jnp.exp(-jnp.abs(u))
    if float(gamma).is_integer() and 0.0 <= gamma <= 8.0:
        # exp(gamma * logsigmoid(-u)) == sigmoid(-u) ** gamma   (drops one exp)
        n = int(gamma)
        if n == 0:
            focal = jnp.ones_like(u)
        else:
            sig = jnp.where(u >= 0.0, e_u, 1.0) / (1.0 + e_u)   # exact sigmoid(-u)
            focal = sig
            for _ in range(n - 1):
                focal = focal * sig
    else:
        # generic gamma: exp(-gamma * softplus(u))
        focal = jnp.exp(-gamma * (jnp.maximum(u, 0.0) + jnp.log(1.0 + e_u)))

    contrib = focal * bce

    if needs_mask:
        # Mask the ragged tail and any partial-block garbage rows by global
        # flat position; valid_rows / valid_cols are static Python ints.
        base_row = (pl.program_id(0) * blocks_per_core + gi) * tr
        row = base_row + lax.broadcasted_iota(jnp.int32, (tr, tc), 0)
        if valid_cols == 0:
            mask = row < valid_rows
        else:
            col = lax.broadcasted_iota(jnp.int32, (tr, tc), 1)
            mask = (row < valid_rows) | ((row == valid_rows) & (col < valid_cols))
        contrib = jnp.where(mask, contrib, 0.0)

    # Fold groups of 8 sublane rows (layout-preserving reshape + vector adds)
    # so only a tiny lane-dense (8, tc) block stays resident / gets written.
    if tr > 8:
        contrib = contrib.reshape(tr // 8, 8, tc).sum(axis=0)
    out_ref[...] += contrib


def _round_up(v: int, m: int) -> int:
    return ((v + m - 1) // m) * m


def _num_tensorcores() -> int:
    """Conservative local-TensorCore count (2 only on dual-TC / megacore chips)."""
    try:
        kind = jax.devices()[0].device_kind.lower()
        if ("v7" in kind) or ("v5p" in kind) or ("v4" in kind):
            return 2
    except Exception:
        pass
    return 1


def _tile_geometry(total: int):
    """Choose (tc, tr, pad) so the flat input can be viewed as (rows, tc) with a
    free reshape whenever total is a multiple of 128 (the common case)."""
    tc = None
    for cand in (1024, 512, 256, 128):
        if total % cand == 0 and total // cand >= 8:
            tc = cand
            break
    if tc is None:
        # Rare fallback (tiny input, or total not a multiple of 128): pad the
        # flat arrays with zeros up to a multiple of 8*128; masked in-kernel.
        tc = _LANE
        padded = _round_up(total, 8 * _LANE)
    else:
        padded = total
    rows = padded // tc
    target_rows = max(8, (_TARGET_BLOCK_ELEMS // tc) // 8 * 8)
    tr = min(target_rows, rows // 8 * 8)
    return tc, tr, padded - total


def focal_loss(x, target, gamma=2.0):
    """Pallas focal loss with logits; matches FocalLoss.forward() exactly
    (arbitrary real-valued targets supported, no binarization)."""
    if x.shape != target.shape:
        raise ValueError(
            f"Target size ({target.shape}) must be the same as input size ({x.shape})")
    if x.ndim < 2:
        raise ValueError("input must have at least 2 dims (N, C, ...)")

    total = x.size
    denom = total // x.shape[1]          # sum(dim=1).mean() == sum(all) / (numel/C)
    gamma = float(gamma)

    tc, tr, pad = _tile_geometry(total)
    rows = (total + pad) // tc
    if pad:
        xf = jnp.concatenate([x.reshape(-1), jnp.zeros((pad,), x.dtype)])
        tf = jnp.concatenate([target.reshape(-1), jnp.zeros((pad,), target.dtype)])
        x2 = xf.reshape(rows, tc)
        t2 = tf.reshape(rows, tc)
    else:
        x2 = x.reshape(rows, tc)          # free bitcast, no HBM copy
        t2 = target.reshape(rows, tc)

    num_blocks = -(-rows // tr)
    two_cores = _num_tensorcores() >= 2
    p = 2 if (two_cores and num_blocks >= 2 and num_blocks % 2 == 0) else 1
    g = num_blocks // p

    kernel = functools.partial(
        _focal_loss_kernel,
        gamma=gamma,
        blocks_per_core=g,
        valid_rows=total // tc,
        valid_cols=total % tc,
        needs_mask=(p * g * tr * tc != total),
    )

    partials = pl.pallas_call(
        kernel,
        out_shape=jax.ShapeDtypeStruct((p * 8, tc), jnp.float32),
        grid_spec=pltpu.PrefetchScalarGridSpec(
            num_scalar_prefetch=0,
            grid=(p, g),
            in_specs=[
                pl.BlockSpec((tr, tc), lambda pi, gi: (pi * g + gi, 0)),
                pl.BlockSpec((tr, tc), lambda pi, gi: (pi * g + gi, 0)),
            ],
            out_specs=pl.BlockSpec((8, tc), lambda pi, gi: (pi, 0)),
        ),
        compiler_params=pltpu.CompilerParams(
            dimension_semantics=("parallel", "arbitrary"),
            vmem_limit_bytes=40 * 1024 * 1024,
        ),
    )(x2, t2)

    # Tiny final reduction (p*8*tc values) + mean scaling in the wrapper.
    return jnp.sum(partials) / jnp.float32(denom)


def _focal_loss_ref(x, t, gamma=2.0):
    """Pure-JAX reference mirroring the PyTorch forward literally."""
    x = x.astype(jnp.float32)
    t = t.astype(jnp.float32)
    max_val = jnp.maximum(-x, 0.0)
    loss = x - x * t + max_val + jnp.log(jnp.exp(-max_val) + jnp.exp(-x - max_val))
    invprobs = jax.nn.log_sigmoid(-x * (t * 2.0 - 1.0))
    loss = jnp.exp(invprobs * gamma) * loss
    return loss.sum(axis=1).mean()


if __name__ == "__main__":
    key = jax.random.PRNGKey(0)
    k1, k2 = jax.random.split(key)

    # 1) NCHW logits + binary targets, default gamma=2 (integer fast path,
    #    zero-copy lane-dense view, no in-kernel masking needed).
    x = jax.random.normal(k1, (2, 4, 16, 16), dtype=jnp.float32)
    target = (jax.random.uniform(k2, (2, 4, 16, 16)) > 0.5).astype(jnp.float32)
    out = jax.block_until_ready(focal_loss(x, target, gamma=2.0))
    ref = _focal_loss_ref(x, target, gamma=2.0)
    assert jnp.allclose(out, ref, atol=1e-5, rtol=1e-4), (out, ref)

    # 2) Ragged size + soft labels + non-integer gamma (pad fallback, generic
    #    exp path, flat-index tail mask).
    xb = jax.random.normal(k1, (3, 5, 7, 11), dtype=jnp.float32)
    tb = jax.random.uniform(k2, (3, 5, 7, 11))
    out2 = jax.block_until_ready(focal_loss(xb, tb, gamma=1.5))
    ref2 = _focal_loss_ref(xb, tb, gamma=1.5)
    assert jnp.allclose(out2, ref2, atol=1e-5, rtol=1e-4), (out2, ref2)

    # 3) Larger NCHW case: multi-step accumulation + partial last block masked
    #    by row index only (zero-copy path).
    xc = jax.random.normal(k2, (4, 8, 56, 56), dtype=jnp.float32)
    tc_ = (jax.random.uniform(k1, (4, 8, 56, 56)) > 0.5).astype(jnp.float32)
    out3 = jax.block_until_ready(focal_loss(xc, tc_, gamma=2.0))
    ref3 = _focal_loss_ref(xc, tc_, gamma=2.0)
    assert jnp.allclose(out3, ref3, atol=1e-5, rtol=1e-4), (out3, ref3)

    print("KERNEL_OK")
</pallas_src>

<mosaic_0001>
module attributes {stable_mosaic.version = 11 : i64} {
  func.func @_focal_loss_kernel(%arg0: i32, %arg1: i32, %arg2: memref<8x256xf32, #tpu.memory_space<vmem>>, %arg3: memref<8x256xf32, #tpu.memory_space<vmem>>, %arg4: memref<8x256xf32, #tpu.memory_space<vmem>>) attributes {dimension_semantics = [#tpu.dimension_semantics<parallel>, #tpu.dimension_semantics<arbitrary>], iteration_bounds = array<i64: 1, 1>, scalar_prefetch = 0 : i64, scratch_operands = 0 : i64, tpu.core_type = #tpu.core_type<tc>, window_params = [{transform_indices = @transform_0, window_bounds = array<i64: 8, 256>}, {transform_indices = @transform_1, window_bounds = array<i64: 8, 256>}, {transform_indices = @transform_2, window_bounds = array<i64: 8, 256>}]} {
    %c0_i32 = arith.constant 0 : i32
    %0 = arith.cmpi eq, %arg1, %c0_i32 : i32
    %1 = arith.extui %0 : i1 to i32
    %c0_i32_0 = arith.constant 0 : i32
    %2 = arith.cmpi ne, %1, %c0_i32_0 : i32
    scf.if %2 {
      %cst_14 = arith.constant 0.000000e+00 : f32
      %35 = vector.broadcast %cst_14 : f32 to vector<8x256xf32>
      %c0_15 = arith.constant 0 : index
      %c0_16 = arith.constant 0 : index
      %36 = vector.load %arg4[%c0_15, %c0_16] : memref<8x256xf32, #tpu.memory_space<vmem>>, vector<8x256xf32>
      tpu.vector_store %arg4[%c0_15, %c0_16], %35 {strides = array<i32>} : memref<8x256xf32, #tpu.memory_space<vmem>>, vector<8x256xf32>,
    } else {
    }
    %c0 = arith.constant 0 : index
    %c0_1 = arith.constant 0 : index
    %3 = vector.load %arg2[%c0, %c0_1] : memref<8x256xf32, #tpu.memory_space<vmem>>, vector<8x256xf32>
    %c0_2 = arith.constant 0 : index
    %c0_3 = arith.constant 0 : index
    %4 = vector.load %arg3[%c0_2, %c0_3] : memref<8x256xf32, #tpu.memory_space<vmem>>, vector<8x256xf32>
    %5 = arith.mulf %3, %4 : vector<8x256xf32>
    %6 = arith.addf %5, %5 : vector<8x256xf32>
    %7 = arith.subf %6, %3 : vector<8x256xf32>
    %8 = math.absf %3 : vector<8x256xf32>
    %cst = arith.constant 0.000000e+00 : f32
    %9 = vector.broadcast %cst : f32 to vector<8x256xf32>
    %10 = arith.subf %9, %8 : vector<8x256xf32>
    %11 = math.exp %10 : vector<8x256xf32>
    %cst_4 = arith.constant 0.000000e+00 : f32
    %12 = vector.broadcast %cst_4 : f32 to vector<8x256xf32>
    %13 = arith.maximumf %3, %12 : vector<8x256xf32>
    %14 = arith.subf %13, %5 : vector<8x256xf32>
    %cst_5 = arith.constant 1.000000e+00 : f32
    %15 = vector.broadcast %cst_5 : f32 to vector<8x256xf32>
    %16 = arith.addf %15, %11 : vector<8x256xf32>
    %17 = math.log %16 : vector<8x256xf32>
    %18 = arith.addf %14, %17 : vector<8x256xf32>
    %19 = math.absf %7 : vector<8x256xf32>
    %cst_6 = arith.constant 0.000000e+00 : f32
    %20 = vector.broadcast %cst_6 : f32 to vector<8x256xf32>
    %21 = arith.subf %20, %19 : vector<8x256xf32>
    %22 = math.exp %21 : vector<8x256xf32>
    %cst_7 = arith.constant 0.000000e+00 : f32
    %23 = vector.broadcast %cst_7 : f32 to vector<8x256xf32>
    %24 = arith.cmpf oge, %7, %23 : vector<8x256xf32>
    %cst_8 = arith.constant 1.000000e+00 : f32
    %25 = vector.broadcast %cst_8 : f32 to vector<8x256xf32>
    %26 = arith.select %24, %22, %25 : vector<8x256xi1>, vector<8x256xf32>
    %cst_9 = arith.constant 1.000000e+00 : f32
    %27 = vector.broadcast %cst_9 : f32 to vector<8x256xf32>
    %28 = arith.addf %27, %22 : vector<8x256xf32>
    %29 = arith.divf %26, %28 : vector<8x256xf32>
    %30 = arith.mulf %29, %29 : vector<8x256xf32>
    %31 = arith.mulf %30, %18 : vector<8x256xf32>
    %c0_10 = arith.constant 0 : index
    %c0_11 = arith.constant 0 : index
    %32 = vector.load %arg4[%c0_10, %c0_11] : memref<8x256xf32, #tpu.memory_space<vmem>>, vector<8x256xf32>
    %33 = arith.addf %32, %31 : vector<8x256xf32>
    %c0_12 = arith.constant 0 : index
    %c0_13 = arith.constant 0 : index
    %34 = vector.load %arg4[%c0_12, %c0_13] : memref<8x256xf32, #tpu.memory_space<vmem>>, vector<8x256xf32>
    tpu.vector_store %arg4[%c0_12, %c0_13], %33 {strides = array<i32>} : memref<8x256xf32, #tpu.memory_space<vmem>>, vector<8x256xf32>,
    return
  }
  func.func @transform_0(%arg0: i32, %arg1: i32) -> (i32, i32) {
    %c1_i32 = arith.constant 1 : i32
    %0 = arith.muli %arg0, %c1_i32 : i32
    %1 = arith.addi %0, %arg1 : i32
    %c0_i32 = arith.constant 0 : i32
    %c0_i32_0 = arith.constant 0 : i32
    return %1, %c0_i32 : i32, i32
  }
  func.func @transform_1(%arg0: i32, %arg1: i32) -> (i32, i32) {
    %c1_i32 = arith.constant 1 : i32
    %0 = arith.muli %arg0, %c1_i32 : i32
    %1 = arith.addi %0, %arg1 : i32
    %c0_i32 = arith.constant 0 : i32
    %c0_i32_0 = arith.constant 0 : i32
    return %1, %c0_i32 : i32, i32
  }
  func.func @transform_2(%arg0: i32, %arg1: i32) -> (i32, i32) {
    %c0_i32 = arith.constant 0 : i32
    %c0_i32_0 = arith.constant 0 : i32
    return %arg0, %c0_i32 : i32, i32
  }
}

</mosaic_0001>

<llo_original>
// kernel: tpu_custom_call.1
$region0: #{tpu_custom_call.1}
  #allocation0 [shape = 'u32[]', space=smem, size = 0x4, offset = 0x4, fixed_abs, tag = 'smem constant byte address 0x4 - core index']
  #allocation1 [shape = 'u32[144,128]{1,0:T(1,128)}', space=vmem, size = 0x12000, scoped, tag = 'internal scratch']
  %s0 = inlined_call_operand.hbm [shape: f32[8,256], index: 0, kind: input, shape index: {}]
  %s1 = inlined_call_operand.hbm [shape: f32[8,256], index: 1, kind: input, shape index: {}]
  %s2 = inlined_call_operand.hbm [shape: f32[8,256], index: 2, kind: output, shape index: {}]
  %s3 = sld [smem:[#allocation0]]
  $region30: #{tpu_custom_call.1} parent=0
    _
  %s5 = ssub.s32 1, %s3
  %s6 = scalar_select 0, %s5, %s3
  $region1: #{tpu_custom_call.1} parent=0
    #allocation2 [shape = 'u8[8192]{0}', space=vmem, size = 0x2000, scoped, tag = 'input window, operand 0, single buffered']
    #allocation3 [shape = 's32[1]{0}', space=sflag, size = 0x4, scoped, tag = 'scoped memory for tpu_custom_call.1']
    #allocation4 [shape = 's32[1]{0}', space=sflag, size = 0x4, scoped, tag = 'scoped memory for tpu_custom_call.1']
    #allocation5 [shape = 'u8[8192]{0}', space=vmem, size = 0x2000, scoped, tag = 'input window, operand 1, single buffered']
    #allocation6 [shape = 's32[1]{0}', space=sflag, size = 0x4, scoped, tag = 'scoped memory for tpu_custom_call.1']
    #allocation7 [shape = 'u8[8192]{0}', space=vmem, size = 0x2000, scoped, tag = 'output window, operand 0, single buffered']
    %7 = vsyncpa [#allocation3], 0
    %8 = vsyncpa [#allocation6], 0
    %9 = vsyncpa [#allocation4], 0
    // Predicated region
    $region2: #{tpu_custom_call.1} parent=1 // pred_check
      _
    $region3: #{tpu_custom_call.1} parent=1 // pred_check_branch
      %11 = sbr.rel (0) target = $region5
    $region4: #{tpu_custom_call.1} parent=1 // pred_region
      %s12 = sadd.s32 0, 0
      %s14 = ssub.s32 256, 256
      %15 = vsyncadd [#allocation3], %s14
      %s16 = smul.addr %s12, 2
      %s17 = smul.addr %s16, 128
      %s18 = scalar_lea.hbm %s0, %s17
      %s20 = sshll.u32 [#allocation2], 4
      %s21 = int_to_ptr.vmem [resolvable:$true] %s20
      %23 = dma.hbm_to_vmem [thread:$0]  %s18, 256, %s21, [#allocation3]
    $region5: #{tpu_custom_call.1} parent=1 // pred_fallthru
      _
    // Predicated region
    $region6: #{tpu_custom_call.1} parent=1 // pred_check
      _
    $region7: #{tpu_custom_call.1} parent=1 // pred_check_branch
      %25 = sbr.rel (0) target = $region9
    $region8: #{tpu_custom_call.1} parent=1 // pred_region
      %s26 = sadd.s32 0, 0
      %s28 = ssub.s32 256, 256
      %29 = vsyncadd [#allocation6], %s28
      %s30 = smul.addr %s26, 2
      %s31 = smul.addr %s30, 128
      %s32 = scalar_lea.hbm %s1, %s31
      %s34 = sshll.u32 [#allocation5], 4
      %s35 = int_to_ptr.vmem [resolvable:$true] %s34
      %37 = dma.hbm_to_vmem [thread:$0]  %s32, 256, %s35, [#allocation6]
    $region9: #{tpu_custom_call.1} parent=1 // pred_fallthru
      _
    // Predicated region
    $region10: #{tpu_custom_call.1} parent=1 // pred_check
      _
    $region11: #{tpu_custom_call.1} parent=1 // pred_check_branch
      %39 = sbr.rel (0) target = $region13
    $region12: #{tpu_custom_call.1} parent=1 // pred_region
      %40 = dma.done [#allocation3], 256
    $region13: #{tpu_custom_call.1} parent=1 // pred_fallthru
      _
    // Predicated region
    $region14: #{tpu_custom_call.1} parent=1 // pred_check
      _
    $region15: #{tpu_custom_call.1} parent=1 // pred_check_branch
      %42 = sbr.rel (0) target = $region17
    $region16: #{tpu_custom_call.1} parent=1 // pred_region
      %43 = dma.done [#allocation6], 256
    $region17: #{tpu_custom_call.1} parent=1 // pred_fallthru
      _
    %s44 = sadd.s32 0, 0
    %s45 = sadd.s32 0, 0
    %p46 = scmp.eq.s32.totalorder 0, 0
    // Predicated region
    $region18: #{tpu_custom_call.1} parent=1 // pred_check
      %p47 = pneg %p46
    $region19: #{tpu_custom_call.1} parent=1 // pred_check_branch
      %49 = sbr.rel (%p47) target = $region21
    $region20: #{tpu_custom_call.1} parent=1 // pred_region
      %50 = vst [vmem:[#allocation7] sm:$0xff] 0.0
      %51 = vst [vmem:[#allocation7 + $0x8] sm:$0xff] 0.0
    $region21: #{tpu_custom_call.1} parent=1 // pred_fallthru
      _
    %v52 = vld [vmem:[#allocation2] sm:$0xff]
    %v53 = vld [vmem:[#allocation2 + $0x8] sm:$0xff]
    %v54 = vld [vmem:[#allocation5] sm:$0xff]
    %v55 = vld [vmem:[#allocation5 + $0x8] sm:$0xff]
    %v56 = vmul.f32 %v52, %v54
    %v57 = vmul.f32 %v53, %v55
    %v58 = vadd.f32 %v56, %v56
    %v59 = vadd.f32 %v57, %v57
    %v60 = vsub.f32 %v58, %v52
    %v61 = vsub.f32 %v59, %v53
    %v62 = vand.u32 2147483647, %v52
    %v63 = vand.u32 2147483647, %v53
    %v64 = vsub.f32 0.0, %v62
    %v65 = vsub.f32 0.0, %v63
    %v66 = vmul.f32 %v64, 1.442695
    %v67 = vpow.pop %v66
    %v68 = vmul.f32 %v65, 1.442695
    %v69 = vpow.pop %v68
    %v70 = vmax.f32 %v52, 0.0
    %v71 = vmax.f32 %v53, 0.0
    %v72 = vsub.f32 %v70, %v56
    %v73 = vsub.f32 %v71, %v57
    %v74 = vadd.f32 %v67, 1.0
    %v75 = vadd.f32 %v69, 1.0
    %v76 = vlog2.pop %v74
    %v77 = vmul.f32 %v76, 0.6931472
    %v78 = vlog2.pop %v75
    %v79 = vmul.f32 %v78, 0.6931472
    %v80 = vadd.f32 %v72, %v77
    %v81 = vadd.f32 %v73, %v79
    %v82 = vand.u32 2147483647, %v60
    %v83 = vand.u32 2147483647, %v61
    %v84 = vsub.f32 0.0, %v82
    %v85 = vsub.f32 0.0, %v83
    %v86 = vmul.f32 %v84, 1.442695
    %v87 = vpow.pop %v86
    %v88 = vmul.f32 %v85, 1.442695
    %v89 = vpow.pop %v88
    %vm90 = vcmp.ge.f32.partialorder %v60, 0.0
    %vm91 = vcmp.ge.f32.partialorder %v61, 0.0
    %v92 = vsel %vm90, %v87, 1.0
    %v93 = vsel %vm91, %v89, 1.0
    %v94 = vadd.f32 %v87, 1.0
    %v95 = vadd.f32 %v89, 1.0
    %v96 = vrcp.pop %v94
    %v97 = vmul.f32 %v92, %v96
    %v98 = vrcp.pop %v95
    %v99 = vmul.f32 %v93, %v98
    %v100 = vmul.f32 %v97, %v97
    %v101 = vmul.f32 %v99, %v99
    %v102 = vmul.f32 %v100, %v80
    %v103 = vmul.f32 %v101, %v81
    %v104 = vld [vmem:[#allocation7] sm:$0xff]
    %v105 = vld [vmem:[#allocation7 + $0x8] sm:$0xff]
    %v106 = vadd.f32 %v104, %v102
    %v107 = vadd.f32 %v105, %v103
    %108 = vst [vmem:[#allocation7] sm:$0xff] %v106
    %109 = vst [vmem:[#allocation7 + $0x8] sm:$0xff] %v107
    // Predicated region
    $region22: #{tpu_custom_call.1} parent=1 // pred_check
      _
    $region23: #{tpu_custom_call.1} parent=1 // pred_check_branch
      %111 = sbr.rel (0) target = $region25
    $region24: #{tpu_custom_call.1} parent=1 // pred_region
      %s113 = ssub.s32 256, 256
      %114 = vsyncadd [#allocation4], %s113
      %s116 = sshll.u32 [#allocation7], 4
      %s117 = int_to_ptr.vmem [resolvable:$true] %s116
      %119 = dma.vmem_to_hbm [thread:$0]  %s117, 256, %s2, [#allocation4]
    $region25: #{tpu_custom_call.1} parent=1 // pred_fallthru
      _
    // Predicated region
    $region26: #{tpu_custom_call.1} parent=1 // pred_check
      _
    $region27: #{tpu_custom_call.1} parent=1 // pred_check_branch
      %121 = sbr.rel (0) target = $region29
    $region28: #{tpu_custom_call.1} parent=1 // pred_region
      %122 = dma.done [#allocation4], 256
    $region29: #{tpu_custom_call.1} parent=1 // pred_fallthru
      _
    %123 = vsyncpa [#allocation3], 1
    %124 = vsyncpa [#allocation6], 1
    %125 = vsyncpa [#allocation4], 1

</llo_original>
